<compile_context>
chip_gen: v7x
topology: tpu7x:2x2x1
jax: 0.10.0
libtpu: 0.0.40
codegen_flags: <defaults>
</compile_context>

<pallas_src>
import math

import jax
import jax.numpy as jnp
from jax.experimental import pallas as pl
from jax.experimental.pallas import tpu as pltpu

_SQRT_2_OVER_PI = math.sqrt(2.0 / math.pi)
_GELU_COEF = 0.044715
_LANE = 128


def _chip_generation() -> str:
    """Best-effort TPU generation: 'v5e', 'v6e', 'v7x', or 'unknown'."""
    try:
        kind = jax.devices()[0].device_kind.lower()
    except Exception:
        return "unknown"
    if "v7" in kind:
        return "v7x"
    if "v6" in kind:
        return "v6e"
    if "v5" in kind:
        return "v5e"
    return "unknown"


def _gen_config(gen: str):
    """Returns (target_block_bytes, vmem_limit_bytes, num_tensorcores, native_bf16)."""
    if gen == "v7x":
        # 3.2 TB/s HBM: 4 MiB blocks amortize per-step overhead; 4 buffers =
        # 16 MiB, still under the 32 MiB scoped default.  Raise the limit for
        # headroom under the 64 MiB physical VMEM.
        return 4 * 1024 * 1024, 48 * 1024 * 1024, 2, True
    if gen == "v6e":
        # Tile-sweep curve is flat past ~2 MiB; 4 MiB is safe (16 MiB < 32 MiB).
        return 4 * 1024 * 1024, None, 1, True
    # v5e / unknown: 2 MiB blocks -> 8 MiB of buffers < 16 MiB scoped default.
    return 2 * 1024 * 1024, None, 1, False


def _make_gelu_kernel(compute_dtype):
    def _gelu_kernel(x_ref, o_ref):
        x = x_ref[...].astype(compute_dtype)
        # 0.5 * x * (1 + tanh(sqrt(2/pi) * (x + 0.044715 * x^3)))
        inner = _SQRT_2_OVER_PI * (x + _GELU_COEF * x * x * x)
        y = 0.5 * x * (1.0 + jnp.tanh(inner))
        o_ref[...] = y.astype(o_ref.dtype)

    return _gelu_kernel


def _round_up(v: int, m: int) -> int:
    return ((v + m - 1) // m) * m


def _pick_tile_rows(rows: int, itemsize: int, block_bytes: int, num_cores: int) -> int:
    """Row-tile giving ~block_bytes per (tr, 128) block, balanced across cores."""
    tr = block_bytes // (_LANE * itemsize)
    # Multiple of 16 keeps bf16 sublane packing legal (and is a multiple of 8
    # for f32).
    tr = max(16, (tr // 16) * 16)
    if rows <= tr:
        # Full-extent block dim is always legal (even if not a multiple of 8).
        return rows
    g = pl.cdiv(rows, tr)
    if num_cores > 1 and g <= 2 * num_cores:
        # Avoid (full block, tiny remainder) splits that leave one TensorCore
        # nearly idle on megacore chips: make blocks near-equal instead.
        g = _round_up(g, num_cores)
        tr = min(tr, max(16, _round_up(pl.cdiv(rows, g), 16)))
    return tr


def _gelu_jnp(x):
    """Plain-JAX fallback for tiny tails (f32 math, same tanh approximation)."""
    xf = x.astype(jnp.float32)
    y = 0.5 * xf * (1.0 + jnp.tanh(_SQRT_2_OVER_PI * (xf + _GELU_COEF * xf * xf * xf)))
    return y.astype(x.dtype)


def gelu_pallas(x: jax.Array) -> jax.Array:
    """Tanh-approximation GELU (matches the PyTorch module), any shape."""
    orig_shape = x.shape
    orig_dtype = x.dtype
    n = x.size
    if n == 0:
        return x
    itemsize = jnp.dtype(orig_dtype).itemsize

    gen = _chip_generation()
    block_bytes, vmem_limit, num_cores, native_bf16 = _gen_config(gen)

    # v6e/v7x have bf16 VPU/EUP paths: skip the f32 upcast for bf16 inputs so
    # VALU/convert slots don't become the binder.  v5e must upcast to f32.
    if native_bf16 and orig_dtype == jnp.bfloat16:
        compute_dtype = jnp.bfloat16
    else:
        compute_dtype = jnp.float32

    rows_aligned = n // _LANE
    tail = n - rows_aligned * _LANE

    if rows_aligned == 0:
        # Less than one 128-lane row: not worth a kernel launch.
        return _gelu_jnp(x).reshape(orig_shape)

    if tail:
        # Ragged: kernel handles the 128-aligned prefix, jnp handles the tail
        # (avoids full-array pad + trailing-slice HBM passes).
        x_flat = x.reshape(-1)
        x2d = x_flat[: rows_aligned * _LANE].reshape(rows_aligned, _LANE)
    else:
        # Fast path: pure reshape, no extra HBM traffic.
        x2d = x.reshape(rows_aligned, _LANE)

    tr = _pick_tile_rows(rows_aligned, itemsize, block_bytes, num_cores)
    grid = (pl.cdiv(rows_aligned, tr),)  # partial last block masked by Pallas

    # Advisory cost hint so XLA can overlap this mem-bound call with neighbors.
    cost = pl.CostEstimate(
        flops=8 * n,
        transcendentals=n,
        bytes_accessed=2 * n * itemsize,
    )

    # TODO(synk): if an xprof trace on v7x shows exposed DMA at block
    # boundaries, sweep pipeline_mode=pl.Buffered(3) on the input BlockSpec.
    out2d = pl.pallas_call(
        _make_gelu_kernel(compute_dtype),
        out_shape=jax.ShapeDtypeStruct((rows_aligned, _LANE), orig_dtype),
        grid_spec=pltpu.PrefetchScalarGridSpec(
            num_scalar_prefetch=0,
            grid=grid,
            in_specs=[pl.BlockSpec((tr, _LANE), lambda i: (i, 0))],
            out_specs=pl.BlockSpec((tr, _LANE), lambda i: (i, 0)),
        ),
        compiler_params=pltpu.CompilerParams(
            dimension_semantics=("parallel",),
            vmem_limit_bytes=vmem_limit,
        ),
        cost_estimate=cost,
    )(x2d)

    if tail:
        tail_out = _gelu_jnp(x_flat[rows_aligned * _LANE:])
        out = jnp.concatenate([out2d.reshape(-1), tail_out]).reshape(orig_shape)
    else:
        out = out2d.reshape(orig_shape)
    return out


def gelu_ref(x):
    return 0.5 * x * (
        1.0 + jnp.tanh(_SQRT_2_OVER_PI * (x + _GELU_COEF * jnp.power(x, 3)))
    )


if __name__ == "__main__":
    key = jax.random.PRNGKey(0)
    # NCHW-shaped input, consistent with typical feature-map usage.
    x = jax.random.normal(key, (2, 4, 16, 16), dtype=jnp.float32)

    y = gelu_pallas(x)
    y = jax.block_until_ready(y)

    y_ref = gelu_ref(x)
    assert y.shape == x.shape and y.dtype == x.dtype
    assert jnp.allclose(y, y_ref, atol=1e-5, rtol=1e-5), "mismatch vs reference"

    # Also exercise a ragged size through the prefix+tail path.
    x2 = jax.random.normal(jax.random.PRNGKey(1), (3, 7, 13), dtype=jnp.float32)
    y2 = jax.block_until_ready(gelu_pallas(x2))
    assert y2.shape == x2.shape and y2.dtype == x2.dtype
    assert jnp.allclose(y2, gelu_ref(x2), atol=1e-5, rtol=1e-5), "ragged mismatch"

    print("KERNEL_OK")
</pallas_src>

<mosaic_0001>
module attributes {stable_mosaic.version = 11 : i64} {
  func.func @_gelu_kernel(%arg0: i32, %arg1: memref<16x128xf32, #tpu.memory_space<vmem>>, %arg2: memref<16x128xf32, #tpu.memory_space<vmem>>) attributes {dimension_semantics = [#tpu.dimension_semantics<parallel>], iteration_bounds = array<i64: 1>, scalar_prefetch = 0 : i64, scratch_operands = 0 : i64, tpu.core_type = #tpu.core_type<tc>, window_params = [{transform_indices = @transform_0, window_bounds = array<i64: 16, 128>}, {transform_indices = @transform_1, window_bounds = array<i64: 16, 128>}]} {
    %c0 = arith.constant 0 : index
    %c0_0 = arith.constant 0 : index
    %0 = vector.load %arg1[%c0, %c0_0] : memref<16x128xf32, #tpu.memory_space<vmem>>, vector<16x128xf32>
    %cst = arith.constant 4.471500e-02 : f32
    %1 = vector.broadcast %cst : f32 to vector<16x128xf32>
    %2 = arith.mulf %1, %0 : vector<16x128xf32>
    %3 = arith.mulf %2, %0 : vector<16x128xf32>
    %4 = arith.mulf %3, %0 : vector<16x128xf32>
    %5 = arith.addf %0, %4 : vector<16x128xf32>
    %cst_1 = arith.constant 0.797884583 : f32
    %6 = vector.broadcast %cst_1 : f32 to vector<16x128xf32>
    %7 = arith.mulf %6, %5 : vector<16x128xf32>
    %cst_2 = arith.constant 5.000000e-01 : f32
    %8 = vector.broadcast %cst_2 : f32 to vector<16x128xf32>
    %9 = arith.mulf %8, %0 : vector<16x128xf32>
    %10 = math.tanh %7 : vector<16x128xf32>
    %cst_3 = arith.constant 1.000000e+00 : f32
    %11 = vector.broadcast %cst_3 : f32 to vector<16x128xf32>
    %12 = arith.addf %11, %10 : vector<16x128xf32>
    %13 = arith.mulf %9, %12 : vector<16x128xf32>
    %c0_4 = arith.constant 0 : index
    %c0_5 = arith.constant 0 : index
    %14 = vector.load %arg2[%c0_4, %c0_5] : memref<16x128xf32, #tpu.memory_space<vmem>>, vector<16x128xf32>
    tpu.vector_store %arg2[%c0_4, %c0_5], %13 {strides = array<i32>} : memref<16x128xf32, #tpu.memory_space<vmem>>, vector<16x128xf32>,
    return
  }
  func.func @transform_0(%arg0: i32) -> (i32, i32) {
    %c0_i32 = arith.constant 0 : i32
    %c0_i32_0 = arith.constant 0 : i32
    return %arg0, %c0_i32 : i32, i32
  }
  func.func @transform_1(%arg0: i32) -> (i32, i32) {
    %c0_i32 = arith.constant 0 : i32
    %c0_i32_0 = arith.constant 0 : i32
    return %arg0, %c0_i32 : i32, i32
  }
}

</mosaic_0001>

<llo_original>
// kernel: tpu_custom_call.1
$region0: #{tpu_custom_call.1}
  #allocation0 [shape = 'u32[]', space=smem, size = 0x4, offset = 0x4, fixed_abs, tag = 'smem constant byte address 0x4 - core index']
  #allocation1 [shape = 'u32[144,128]{1,0:T(1,128)}', space=vmem, size = 0x12000, scoped, tag = 'internal scratch']
  %s0 = inlined_call_operand.hbm [shape: f32[16,128], index: 0, kind: input, shape index: {}]
  %s1 = inlined_call_operand.hbm [shape: f32[16,128], index: 1, kind: output, shape index: {}]
  %s2 = sld [smem:[#allocation0]]
  $region18: #{tpu_custom_call.1} parent=0
    _
  %s4 = ssub.s32 1, %s2
  %s5 = scalar_select 0, %s4, %s2
  $region1: #{tpu_custom_call.1} parent=0
    #allocation2 [shape = 'u8[8192]{0}', space=vmem, size = 0x2000, scoped, tag = 'input window, operand 0, single buffered']
    #allocation3 [shape = 's32[1]{0}', space=sflag, size = 0x4, scoped, tag = 'scoped memory for tpu_custom_call.1']
    #allocation4 [shape = 's32[1]{0}', space=sflag, size = 0x4, scoped, tag = 'scoped memory for tpu_custom_call.1']
    #allocation5 [shape = 'u8[8192]{0}', space=vmem, size = 0x2000, scoped, tag = 'output window, operand 0, single buffered']
    %6 = vsyncpa [#allocation3], 0
    %7 = vsyncpa [#allocation4], 0
    // Predicated region
    $region2: #{tpu_custom_call.1} parent=1 // pred_check
      _
    $region3: #{tpu_custom_call.1} parent=1 // pred_check_branch
      %9 = sbr.rel (0) target = $region5
    $region4: #{tpu_custom_call.1} parent=1 // pred_region
      %s11 = ssub.s32 256, 256
      %12 = vsyncadd [#allocation3], %s11
      %s13 = sshll.u32 [#allocation2], 4
      %s14 = int_to_ptr.vmem [resolvable:$true] %s13
      %19 = dma.hbm_to_vmem [thread:$0]  %s0, 256, %s14, [#allocation3], 128, 128, 8
    $region5: #{tpu_custom_call.1} parent=1 // pred_fallthru
      _
    // Predicated region
    $region6: #{tpu_custom_call.1} parent=1 // pred_check
      _
    $region7: #{tpu_custom_call.1} parent=1 // pred_check_branch
      %21 = sbr.rel (0) target = $region9
    $region8: #{tpu_custom_call.1} parent=1 // pred_region
      %22 = dma.done [#allocation3], 256
    $region9: #{tpu_custom_call.1} parent=1 // pred_fallthru
      _
    %v23 = vld [vmem:[#allocation2] sm:$0xff]
    %v24 = vld [vmem:[#allocation2 + $0x8] sm:$0xff]
    %v25 = vmul.f32 %v23, 0.044715
    %v26 = vmul.f32 %v24, 0.044715
    %v27 = vmul.f32 %v25, %v23
    %v28 = vmul.f32 %v26, %v24
    %v29 = vmul.f32 %v27, %v23
    %v30 = vmul.f32 %v28, %v24
    %v31 = vadd.f32 %v23, %v29
    %v32 = vadd.f32 %v24, %v30
    %v33 = vmul.f32 %v31, 0.7978846
    %v34 = vmul.f32 %v32, 0.7978846
    %v35 = vmul.f32 %v23, 0.5
    %v36 = vmul.f32 %v24, 0.5
    %v37 = vtanh.pop %v33
    %v38 = vtanh.pop %v34
    %v39 = vadd.f32 %v37, 1.0
    %v40 = vadd.f32 %v38, 1.0
    %v41 = vmul.f32 %v35, %v39
    %v42 = vmul.f32 %v36, %v40
    %43 = vst [vmem:[#allocation5] sm:$0xff] %v41
    %44 = vst [vmem:[#allocation5 + $0x8] sm:$0xff] %v42
    // Predicated region
    $region10: #{tpu_custom_call.1} parent=1 // pred_check
      _
    $region11: #{tpu_custom_call.1} parent=1 // pred_check_branch
      %46 = sbr.rel (0) target = $region13
    $region12: #{tpu_custom_call.1} parent=1 // pred_region
      %s48 = ssub.s32 256, 256
      %49 = vsyncadd [#allocation4], %s48
      %s50 = sshll.u32 [#allocation5], 4
      %s51 = int_to_ptr.vmem [resolvable:$true] %s50
      %56 = dma.vmem_to_hbm [thread:$0]  %s51, 256, %s1, [#allocation4], 128, 128, 8
    $region13: #{tpu_custom_call.1} parent=1 // pred_fallthru
      _
    // Predicated region
    $region14: #{tpu_custom_call.1} parent=1 // pred_check
      _
    $region15: #{tpu_custom_call.1} parent=1 // pred_check_branch
      %58 = sbr.rel (0) target = $region17
    $region16: #{tpu_custom_call.1} parent=1 // pred_region
      %59 = dma.done [#allocation4], 256
    $region17: #{tpu_custom_call.1} parent=1 // pred_fallthru
      _
    %60 = vsyncpa [#allocation3], 1
    %61 = vsyncpa [#allocation4], 1

</llo_original>
